<compile_context>
chip_gen: v7x
topology: tpu7x:2x2x1
jax: 0.10.0
libtpu: 0.0.40
codegen_flags: <defaults>
</compile_context>

<pallas_src>
import functools

import jax
import jax.numpy as jnp
from jax.experimental import pallas as pl
from jax.experimental.pallas import tpu as pltpu


def _round_up(x, m):
    return (x + m - 1) // m * m


def _k_tiles(kc):
    tk = min(512, _round_up(kc, 128))
    return tk, _round_up(kc, tk)


def _m_tiles(m):
    tm = min(256, _round_up(m, 128))
    return tm, _round_up(m, tm)


# ----------------------------------------------------------------------------
# Fused kernel: conv-as-matmul (bf16 MXU, f32 accumulate) + bias + squash
# ----------------------------------------------------------------------------
def _caps_fused_kernel(w_ref, p_ref, b_ref, o_ref, acc_ref, *,
                       caps, dim, cout, coutp):
    # w_ref:   (Coutp, TK) bf16  flattened conv weight (K-tile, VMEM-resident)
    # p_ref:   (TK, TM)    bf16  transposed im2col patches (streamed)
    # b_ref:   (Coutp, 1)  f32   bias column
    # o_ref:   (Coutp, TM) f32   squashed output (lane-dense along M)
    # acc_ref: (Coutp, TM) f32   accumulator scratch
    k = pl.program_id(1)

    @pl.when(k == 0)
    def _init():
        acc_ref[...] = jnp.zeros_like(acc_ref)

    acc_ref[...] += jnp.dot(w_ref[...], p_ref[...],
                            preferred_element_type=jnp.float32)

    @pl.when(k == pl.num_programs(1) - 1)
    def _epilogue():
        # Per-capsule squash, one (dim, TM) sublane strip at a time so the
        # live temporaries stay at a few vregs regardless of tile size.
        for c in range(caps):
            lo = c * dim
            v = acc_ref[lo:lo + dim, :] + b_ref[lo:lo + dim, :]
            l2 = jnp.sum(v * v, axis=0, keepdims=True)            # (1, TM)
            # squash scale = l2/(1+l2)/sqrt(l2) = l2 * rsqrt(l2*(1+l2)^2);
            # eps-guarded so zero-length (padded) capsules map to 0, not NaN.
            scale = l2 * jax.lax.rsqrt((l2 + 1e-12) * (1.0 + l2) * (1.0 + l2))
            o_ref[lo:lo + dim, :] = v * scale
        if coutp > cout:                     # zero any padded output rows
            o_ref[cout:, :] = jnp.zeros((coutp - cout, o_ref.shape[1]),
                                        o_ref.dtype)


# ----------------------------------------------------------------------------
# Parameter prep (done once, hoisted out of the per-call forward)
# ----------------------------------------------------------------------------
def prepare_caps_params(weight, bias):
    """Pad + bf16-cast the conv parameters once at init."""
    cout, cin, ks, _ = weight.shape
    kc = cin * ks * ks
    coutp = _round_up(cout, 16)              # bf16 sublane tile = 16
    _, kp = _k_tiles(kc)
    w2d = weight.reshape(cout, kc).astype(jnp.bfloat16)
    w_p = jnp.pad(w2d, ((0, coutp - cout), (0, kp - kc)))
    b_p = jnp.pad(bias.astype(jnp.float32), (0, coutp - cout)).reshape(coutp, 1)
    return w_p, b_p


# ----------------------------------------------------------------------------
# Forward (mirror of PrimaryCapsLayer.forward)
# ----------------------------------------------------------------------------
def primary_caps_forward(x, w_p, b_p, output_caps, output_dim,
                         kernel_size, stride):
    """x: (N, Cin, H, W) NCHW. Returns (N, output_caps*OH*OW, output_dim)."""
    n, cin, h, w = x.shape
    ks = kernel_size
    caps, dim = output_caps, output_dim
    cout = caps * dim
    coutp = w_p.shape[0]
    oh = (h - ks) // stride + 1
    ow = (w - ks) // stride + 1
    m = n * oh * ow
    kc = cin * ks * ks
    tk, kp = _k_tiles(kc)
    tm, mp = _m_tiles(m)
    assert w_p.shape == (coutp, kp) and b_p.shape == (coutp, 1)

    # Transposed im2col: rows ordered (c, kh, kw) to match PyTorch's
    # weight.reshape(Cout, Cin*K*K); columns ordered (n, oh, ow).
    cols = [x[:, :, i:i + stride * oh:stride, j:j + stride * ow:stride]
            for i in range(ks) for j in range(ks)]        # each (N, Cin, OH, OW)
    patches = jnp.stack(cols, axis=2)                     # (N, Cin, K*K, OH, OW)
    patches = patches.transpose(1, 2, 0, 3, 4).reshape(kc, m)
    patches_p = jnp.pad(patches.astype(jnp.bfloat16),
                        ((0, kp - kc), (0, mp - m)))

    kernel = functools.partial(_caps_fused_kernel, caps=caps, dim=dim,
                               cout=cout, coutp=coutp)
    out_p = pl.pallas_call(
        kernel,
        out_shape=jax.ShapeDtypeStruct((coutp, mp), jnp.float32),
        grid_spec=pltpu.PrefetchScalarGridSpec(
            num_scalar_prefetch=0,
            grid=(mp // tm, kp // tk),
            in_specs=[
                pl.BlockSpec((coutp, tk), lambda mi, ki: (0, ki)),   # weight
                pl.BlockSpec((tk, tm), lambda mi, ki: (ki, mi)),     # patches
                pl.BlockSpec((coutp, 1), lambda mi, ki: (0, 0)),     # bias
            ],
            out_specs=pl.BlockSpec((coutp, tm), lambda mi, ki: (0, mi)),
            scratch_shapes=[pltpu.VMEM((coutp, tm), jnp.float32)],
        ),
        compiler_params=pltpu.CompilerParams(
            dimension_semantics=("parallel", "arbitrary")),
    )(w_p, patches_p, b_p)

    # Tiny layout permutation kept host-side (fuses under jit) so kernel
    # stores stay lane-dense along M.
    out = out_p[:cout, :m].reshape(caps, dim, n, oh * ow)
    out = out.transpose(2, 0, 3, 1).reshape(n, caps * oh * ow, dim)
    return out


# ----------------------------------------------------------------------------
# Main
# ----------------------------------------------------------------------------
if __name__ == "__main__":
    input_channels = 4
    output_caps = 4
    output_dim = 8
    kernel_size = 3
    stride = 2

    batch, H, W = 2, 16, 16
    Cout = output_caps * output_dim

    key = jax.random.PRNGKey(0)
    kx, kw, kb = jax.random.split(key, 3)

    x = jax.random.normal(kx, (batch, input_channels, H, W), dtype=jnp.float32)

    # Deterministic Conv2d parameter init (PyTorch-style uniform bound).
    fan_in = input_channels * kernel_size * kernel_size
    bound = 1.0 / (fan_in ** 0.5)
    weight = jax.random.uniform(
        kw, (Cout, input_channels, kernel_size, kernel_size),
        minval=-bound, maxval=bound, dtype=jnp.float32)
    bias = jax.random.uniform(kb, (Cout,), minval=-bound, maxval=bound,
                              dtype=jnp.float32)

    # Constant padding / casting done once at init, not per forward call.
    w_p, b_p = prepare_caps_params(weight, bias)

    fwd = jax.jit(primary_caps_forward, static_argnums=(3, 4, 5, 6))
    out = jax.block_until_ready(
        fwd(x, w_p, b_p, output_caps, output_dim, kernel_size, stride))

    # Reference in plain JAX (lax conv + exact PyTorch squash).
    ref_conv = jax.lax.conv_general_dilated(
        x, weight, window_strides=(stride, stride), padding="VALID",
        dimension_numbers=("NCHW", "OIHW", "NCHW"),
    ) + bias.reshape(1, -1, 1, 1)
    N_, C_, OH_, OW_ = ref_conv.shape
    ref = ref_conv.reshape(N_, output_caps, output_dim, OH_, OW_)
    ref = ref.transpose(0, 1, 3, 4, 2).reshape(N_, -1, output_dim)
    l2 = jnp.sum(ref * ref, axis=2, keepdims=True)
    ref = ref * (l2 / (1.0 + l2) / jnp.sqrt(l2))

    assert out.shape == (batch, output_caps * OH_ * OW_, output_dim)
    assert bool(jnp.allclose(out, ref, rtol=2e-2, atol=5e-3)), \
        "mismatch vs reference"

    print("KERNEL_OK")
</pallas_src>

<mosaic_0001>
module attributes {stable_mosaic.version = 11 : i64} {
  func.func @_caps_fused_kernel(%arg0: i32, %arg1: i32, %arg2: memref<32x128xbf16, #tpu.memory_space<vmem>>, %arg3: memref<128x128xbf16, #tpu.memory_space<vmem>>, %arg4: memref<32x1xf32, #tpu.memory_space<vmem>>, %arg5: memref<32x128xf32, #tpu.memory_space<vmem>>, %arg6: memref<32x128xf32, #tpu.memory_space<vmem>>) attributes {dimension_semantics = [#tpu.dimension_semantics<parallel>, #tpu.dimension_semantics<arbitrary>], iteration_bounds = array<i64: 1, 1>, scalar_prefetch = 0 : i64, scratch_operands = 1 : i64, tpu.core_type = #tpu.core_type<tc>, window_params = [{transform_indices = @transform_0, window_bounds = array<i64: 32, 128>}, {transform_indices = @transform_1, window_bounds = array<i64: 128, 128>}, {pipeline_mode = #tpu.pipeline_mode<synchronous>, transform_indices = @transform_2, window_bounds = array<i64: 32, 1>}, {transform_indices = @transform_3, window_bounds = array<i64: 32, 128>}]} {
    %c0_i32 = arith.constant 0 : i32
    %0 = arith.cmpi eq, %arg1, %c0_i32 : i32
    %1 = arith.extui %0 : i1 to i32
    %c0_i32_0 = arith.constant 0 : i32
    %2 = arith.cmpi ne, %1, %c0_i32_0 : i32
    scf.if %2 {
      %cst_10 = arith.constant 0.000000e+00 : f32
      %12 = vector.broadcast %cst_10 : f32 to vector<32x128xf32>
      %c0_11 = arith.constant 0 : index
      %c0_12 = arith.constant 0 : index
      %13 = vector.load %arg6[%c0_11, %c0_12] : memref<32x128xf32, #tpu.memory_space<vmem>>, vector<32x128xf32>
      tpu.vector_store %arg6[%c0_11, %c0_12], %12 {strides = array<i32>} : memref<32x128xf32, #tpu.memory_space<vmem>>, vector<32x128xf32>,
    } else {
    }
    %c0 = arith.constant 0 : index
    %c0_1 = arith.constant 0 : index
    %3 = vector.load %arg6[%c0, %c0_1] : memref<32x128xf32, #tpu.memory_space<vmem>>, vector<32x128xf32>
    %c0_2 = arith.constant 0 : index
    %c0_3 = arith.constant 0 : index
    %4 = vector.load %arg2[%c0_2, %c0_3] : memref<32x128xbf16, #tpu.memory_space<vmem>>, vector<32x128xbf16>
    %c0_4 = arith.constant 0 : index
    %c0_5 = arith.constant 0 : index
    %5 = vector.load %arg3[%c0_4, %c0_5] : memref<128x128xbf16, #tpu.memory_space<vmem>>, vector<128x128xbf16>
    %cst = arith.constant dense<0.000000e+00> : vector<32x128xf32>
    %6 = tpu.matmul %4, %5, %cst {dimension_numbers = #tpu.dot_dimension_numbers<[1], [0], [0], [1], [0, 0, 1, 1], [], []>} : vector<32x128xbf16>, vector<128x128xbf16>, vector<32x128xf32> -> vector<32x128xf32>
    %7 = arith.addf %3, %6 : vector<32x128xf32>
    %c0_6 = arith.constant 0 : index
    %c0_7 = arith.constant 0 : index
    %8 = vector.load %arg6[%c0_6, %c0_7] : memref<32x128xf32, #tpu.memory_space<vmem>>, vector<32x128xf32>
    tpu.vector_store %arg6[%c0_6, %c0_7], %7 {strides = array<i32>} : memref<32x128xf32, #tpu.memory_space<vmem>>, vector<32x128xf32>,
    %c0_i32_8 = arith.constant 0 : i32
    %9 = arith.cmpi eq, %arg1, %c0_i32_8 : i32
    %10 = arith.extui %9 : i1 to i32
    %c0_i32_9 = arith.constant 0 : i32
    %11 = arith.cmpi ne, %10, %c0_i32_9 : i32
    scf.if %11 {
      %c0_10 = arith.constant 0 : index
      %c0_11 = arith.constant 0 : index
      %12 = vector.load %arg6[%c0_10, %c0_11] : memref<32x128xf32, #tpu.memory_space<vmem>>, vector<8x128xf32>
      %c0_12 = arith.constant 0 : index
      %c0_13 = arith.constant 0 : index
      %13 = vector.load %arg4[%c0_12, %c0_13] : memref<32x1xf32, #tpu.memory_space<vmem>>, vector<8x1xf32>
      %14 = vector.broadcast %13 : vector<8x1xf32> to vector<8x128xf32>
      %15 = arith.addf %12, %14 : vector<8x128xf32>
      %16 = arith.mulf %15, %15 : vector<8x128xf32>
      %cst_14 = arith.constant dense<0.000000e+00> : vector<128xf32>
      %17 = vector.multi_reduction <add>, %16, %cst_14 [0] : vector<8x128xf32> to vector<128xf32>
      %18 = vector.shape_cast %17 : vector<128xf32> to vector<1x128xf32>
      %cst_15 = arith.constant 9.99999996E-13 : f32
      %19 = vector.broadcast %cst_15 : f32 to vector<1x128xf32>
      %20 = arith.addf %18, %19 : vector<1x128xf32>
      %cst_16 = arith.constant 1.000000e+00 : f32
      %21 = vector.broadcast %cst_16 : f32 to vector<1x128xf32>
      %22 = arith.addf %21, %18 : vector<1x128xf32>
      %23 = arith.mulf %20, %22 : vector<1x128xf32>
      %cst_17 = arith.constant 1.000000e+00 : f32
      %24 = vector.broadcast %cst_17 : f32 to vector<1x128xf32>
      %25 = arith.addf %24, %18 : vector<1x128xf32>
      %26 = arith.mulf %23, %25 : vector<1x128xf32>
      %27 = math.rsqrt %26 : vector<1x128xf32>
      %28 = arith.mulf %18, %27 : vector<1x128xf32>
      %29 = vector.broadcast %28 : vector<1x128xf32> to vector<8x128xf32>
      %30 = arith.mulf %15, %29 : vector<8x128xf32>
      %c0_18 = arith.constant 0 : index
      %c0_19 = arith.constant 0 : index
      %31 = vector.load %arg5[%c0_18, %c0_19] : memref<32x128xf32, #tpu.memory_space<vmem>>, vector<8x128xf32>
      tpu.vector_store %arg5[%c0_18, %c0_19], %30 {strides = array<i32>} : memref<32x128xf32, #tpu.memory_space<vmem>>, vector<8x128xf32>,
      %c8 = arith.constant 8 : index
      %c0_20 = arith.constant 0 : index
      %32 = vector.load %arg6[%c8, %c0_20] : memref<32x128xf32, #tpu.memory_space<vmem>>, vector<8x128xf32>
      %c8_21 = arith.constant 8 : index
      %c0_22 = arith.constant 0 : index
      %33 = vector.load %arg4[%c8_21, %c0_22] : memref<32x1xf32, #tpu.memory_space<vmem>>, vector<8x1xf32>
      %34 = vector.broadcast %33 : vector<8x1xf32> to vector<8x128xf32>
      %35 = arith.addf %32, %34 : vector<8x128xf32>
      %36 = arith.mulf %35, %35 : vector<8x128xf32>
      %cst_23 = arith.constant dense<0.000000e+00> : vector<128xf32>
      %37 = vector.multi_reduction <add>, %36, %cst_23 [0] : vector<8x128xf32> to vector<128xf32>
      %38 = vector.shape_cast %37 : vector<128xf32> to vector<1x128xf32>
      %cst_24 = arith.constant 9.99999996E-13 : f32
      %39 = vector.broadcast %cst_24 : f32 to vector<1x128xf32>
      %40 = arith.addf %38, %39 : vector<1x128xf32>
      %cst_25 = arith.constant 1.000000e+00 : f32
      %41 = vector.broadcast %cst_25 : f32 to vector<1x128xf32>
      %42 = arith.addf %41, %38 : vector<1x128xf32>
      %43 = arith.mulf %40, %42 : vector<1x128xf32>
      %cst_26 = arith.constant 1.000000e+00 : f32
      %44 = vector.broadcast %cst_26 : f32 to vector<1x128xf32>
      %45 = arith.addf %44, %38 : vector<1x128xf32>
      %46 = arith.mulf %43, %45 : vector<1x128xf32>
      %47 = math.rsqrt %46 : vector<1x128xf32>
      %48 = arith.mulf %38, %47 : vector<1x128xf32>
      %49 = vector.broadcast %48 : vector<1x128xf32> to vector<8x128xf32>
      %50 = arith.mulf %35, %49 : vector<8x128xf32>
      %c8_27 = arith.constant 8 : index
      %c0_28 = arith.constant 0 : index
      %51 = vector.load %arg5[%c8_27, %c0_28] : memref<32x128xf32, #tpu.memory_space<vmem>>, vector<8x128xf32>
      tpu.vector_store %arg5[%c8_27, %c0_28], %50 {strides = array<i32>} : memref<32x128xf32, #tpu.memory_space<vmem>>, vector<8x128xf32>,
      %c16 = arith.constant 16 : index
      %c0_29 = arith.constant 0 : index
      %52 = vector.load %arg6[%c16, %c0_29] : memref<32x128xf32, #tpu.memory_space<vmem>>, vector<8x128xf32>
      %c16_30 = arith.constant 16 : index
      %c0_31 = arith.constant 0 : index
      %53 = vector.load %arg4[%c16_30, %c0_31] : memref<32x1xf32, #tpu.memory_space<vmem>>, vector<8x1xf32>
      %54 = vector.broadcast %53 : vector<8x1xf32> to vector<8x128xf32>
      %55 = arith.addf %52, %54 : vector<8x128xf32>
      %56 = arith.mulf %55, %55 : vector<8x128xf32>
      %cst_32 = arith.constant dense<0.000000e+00> : vector<128xf32>
      %57 = vector.multi_reduction <add>, %56, %cst_32 [0] : vector<8x128xf32> to vector<128xf32>
      %58 = vector.shape_cast %57 : vector<128xf32> to vector<1x128xf32>
      %cst_33 = arith.constant 9.99999996E-13 : f32
      %59 = vector.broadcast %cst_33 : f32 to vector<1x128xf32>
      %60 = arith.addf %58, %59 : vector<1x128xf32>
      %cst_34 = arith.constant 1.000000e+00 : f32
      %61 = vector.broadcast %cst_34 : f32 to vector<1x128xf32>
      %62 = arith.addf %61, %58 : vector<1x128xf32>
      %63 = arith.mulf %60, %62 : vector<1x128xf32>
      %cst_35 = arith.constant 1.000000e+00 : f32
      %64 = vector.broadcast %cst_35 : f32 to vector<1x128xf32>
      %65 = arith.addf %64, %58 : vector<1x128xf32>
      %66 = arith.mulf %63, %65 : vector<1x128xf32>
      %67 = math.rsqrt %66 : vector<1x128xf32>
      %68 = arith.mulf %58, %67 : vector<1x128xf32>
      %69 = vector.broadcast %68 : vector<1x128xf32> to vector<8x128xf32>
      %70 = arith.mulf %55, %69 : vector<8x128xf32>
      %c16_36 = arith.constant 16 : index
      %c0_37 = arith.constant 0 : index
      %71 = vector.load %arg5[%c16_36, %c0_37] : memref<32x128xf32, #tpu.memory_space<vmem>>, vector<8x128xf32>
      tpu.vector_store %arg5[%c16_36, %c0_37], %70 {strides = array<i32>} : memref<32x128xf32, #tpu.memory_space<vmem>>, vector<8x128xf32>,
      %c24 = arith.constant 24 : index
      %c0_38 = arith.constant 0 : index
      %72 = vector.load %arg6[%c24, %c0_38] : memref<32x128xf32, #tpu.memory_space<vmem>>, vector<8x128xf32>
      %c24_39 = arith.constant 24 : index
      %c0_40 = arith.constant 0 : index
      %73 = vector.load %arg4[%c24_39, %c0_40] : memref<32x1xf32, #tpu.memory_space<vmem>>, vector<8x1xf32>
      %74 = vector.broadcast %73 : vector<8x1xf32> to vector<8x128xf32>
      %75 = arith.addf %72, %74 : vector<8x128xf32>
      %76 = arith.mulf %75, %75 : vector<8x128xf32>
      %cst_41 = arith.constant dense<0.000000e+00> : vector<128xf32>
      %77 = vector.multi_reduction <add>, %76, %cst_41 [0] : vector<8x128xf32> to vector<128xf32>
      %78 = vector.shape_cast %77 : vector<128xf32> to vector<1x128xf32>
      %cst_42 = arith.constant 9.99999996E-13 : f32
      %79 = vector.broadcast %cst_42 : f32 to vector<1x128xf32>
      %80 = arith.addf %78, %79 : vector<1x128xf32>
      %cst_43 = arith.constant 1.000000e+00 : f32
      %81 = vector.broadcast %cst_43 : f32 to vector<1x128xf32>
      %82 = arith.addf %81, %78 : vector<1x128xf32>
      %83 = arith.mulf %80, %82 : vector<1x128xf32>
      %cst_44 = arith.constant 1.000000e+00 : f32
      %84 = vector.broadcast %cst_44 : f32 to vector<1x128xf32>
      %85 = arith.addf %84, %78 : vector<1x128xf32>
      %86 = arith.mulf %83, %85 : vector<1x128xf32>
      %87 = math.rsqrt %86 : vector<1x128xf32>
      %88 = arith.mulf %78, %87 : vector<1x128xf32>
      %89 = vector.broadcast %88 : vector<1x128xf32> to vector<8x128xf32>
      %90 = arith.mulf %75, %89 : vector<8x128xf32>
      %c24_45 = arith.constant 24 : index
      %c0_46 = arith.constant 0 : index
      %91 = vector.load %arg5[%c24_45, %c0_46] : memref<32x128xf32, #tpu.memory_space<vmem>>, vector<8x128xf32>
      tpu.vector_store %arg5[%c24_45, %c0_46], %90 {strides = array<i32>} : memref<32x128xf32, #tpu.memory_space<vmem>>, vector<8x128xf32>,
    } else {
    }
    return
  }
  func.func @transform_0(%arg0: i32, %arg1: i32) -> (i32, i32) {
    %c0_i32 = arith.constant 0 : i32
    %c0_i32_0 = arith.constant 0 : i32
    return %c0_i32, %arg1 : i32, i32
  }
  func.func @transform_1(%arg0: i32, %arg1: i32) -> (i32, i32) {
    %c0_i32 = arith.constant 0 : i32
    return %arg1, %arg0 : i32, i32
  }
  func.func @transform_2(%arg0: i32, %arg1: i32) -> (i32, i32) {
    %c0_i32 = arith.constant 0 : i32
    %c0_i32_0 = arith.constant 0 : i32
    %c0_i32_1 = arith.constant 0 : i32
    return %c0_i32, %c0_i32_0 : i32, i32
  }
  func.func @transform_3(%arg0: i32, %arg1: i32) -> (i32, i32) {
    %c0_i32 = arith.constant 0 : i32
    %c0_i32_0 = arith.constant 0 : i32
    return %c0_i32, %arg0 : i32, i32
  }
}

</mosaic_0001>

<llo_original>
// kernel: primary_caps_forward.1
$region0: #{primary_caps_forward.1}
  #allocation0 [shape = 'u32[]', space=smem, size = 0x4, offset = 0x4, fixed_abs, tag = 'smem constant byte address 0x4 - core index']
  #allocation1 [shape = 'u32[144,128]{1,0:T(1,128)}', space=vmem, size = 0x12000, scoped, tag = 'internal scratch']
  #allocation2 [shape = 'f32[32,128]{1,0:T(8,128)}', space=vmem, size = 0x4000, scoped, tag = 'scratch operand']
  %s0 = inlined_call_operand.vmem [shape: bf16[32,128], index: 0, kind: input, shape index: {}]
  %s1 = inlined_call_operand.vmem [shape: bf16[128,128], index: 1, kind: input, shape index: {}]
  %s2 = inlined_call_operand.vmem [shape: f32[32,1], index: 2, kind: input, shape index: {}]
  %s3 = inlined_call_operand.vmem [shape: f32[32,128], index: 3, kind: output, shape index: {}]
  %s4 = sld [smem:[#allocation0]]
  $region30: #{primary_caps_forward.1} parent=0
    _
  %s6 = ssub.s32 1, %s4
  %s7 = scalar_select 0, %s6, %s4
  // Predicated region
  $region2: #{primary_caps_forward.1} parent=0 // pred_check
    _
  $region3: #{primary_caps_forward.1} parent=0 // pred_check_branch
    %9 = sbr.rel (0) target = $region5
  $region4: #{primary_caps_forward.1} parent=0 // pred_region
    _
  $region5: #{primary_caps_forward.1} parent=0 // pred_fallthru
    _
  // Predicated region
  $region6: #{primary_caps_forward.1} parent=0 // pred_check
    _
  $region7: #{primary_caps_forward.1} parent=0 // pred_check_branch
    %11 = sbr.rel (0) target = $region9
  $region8: #{primary_caps_forward.1} parent=0 // pred_region
    _
  $region9: #{primary_caps_forward.1} parent=0 // pred_fallthru
    _
  // Predicated region
  $region10: #{primary_caps_forward.1} parent=0 // pred_check
    _
  $region11: #{primary_caps_forward.1} parent=0 // pred_check_branch
    %13 = sbr.rel (0) target = $region13
  $region12: #{primary_caps_forward.1} parent=0 // pred_region
    _
  $region13: #{primary_caps_forward.1} parent=0 // pred_fallthru
    _
  %p15 = scmp.eq.s32.totalorder 0, 0
  // Predicated region
  $region14: #{primary_caps_forward.1} parent=0 // pred_check
    %p16 = pneg %p15
  $region15: #{primary_caps_forward.1} parent=0 // pred_check_branch
    %18 = sbr.rel (%p16) target = $region17
  $region16: #{primary_caps_forward.1} parent=0 // pred_region
    %19 = vst [vmem:[#allocation2] sm:$0xff] 0.0
    %20 = vst [vmem:[#allocation2 + $0x8] sm:$0xff] 0.0
    %21 = vst [vmem:[#allocation2 + $0x10] sm:$0xff] 0.0
    %22 = vst [vmem:[#allocation2 + $0x18] sm:$0xff] 0.0
  $region17: #{primary_caps_forward.1} parent=0 // pred_fallthru
    _
  %v23 = vld [vmem:[#allocation2] sm:$0xff]
  %v24 = vld [vmem:[#allocation2 + $0x8] sm:$0xff]
  %v25 = vld [vmem:[#allocation2 + $0x10] sm:$0xff]
  %v26 = vld [vmem:[#allocation2 + $0x18] sm:$0xff]
  %v27 = vld [vmem:[%s0] sm:$0xf]
  %v28 = vld [vmem:[%s0 + $0x4] sm:$0xf]
  %v29 = vld [vmem:[%s0 + $0x8] sm:$0xf]
  %v30 = vld [vmem:[%s0 + $0xc] sm:$0xf]
  %v31 = vld [vmem:[%s1] sm:$0xf]
  %v32 = vld [vmem:[%s1 + $0x4] sm:$0xf]
  %v33 = vld [vmem:[%s1 + $0x8] sm:$0xf]
  %v34 = vld [vmem:[%s1 + $0xc] sm:$0xf]
  %v35 = vld [vmem:[%s1 + $0x10] sm:$0xf]
  %v36 = vld [vmem:[%s1 + $0x14] sm:$0xf]
  %v37 = vld [vmem:[%s1 + $0x18] sm:$0xf]
  %v38 = vld [vmem:[%s1 + $0x1c] sm:$0xf]
  %v39 = vld [vmem:[%s1 + $0x20] sm:$0xf]
  %v40 = vld [vmem:[%s1 + $0x24] sm:$0xf]
  %v41 = vld [vmem:[%s1 + $0x28] sm:$0xf]
  %v42 = vld [vmem:[%s1 + $0x2c] sm:$0xf]
  %v43 = vld [vmem:[%s1 + $0x30] sm:$0xf]
  %v44 = vld [vmem:[%s1 + $0x34] sm:$0xf]
  %v45 = vld [vmem:[%s1 + $0x38] sm:$0xf]
  %v46 = vld [vmem:[%s1 + $0x3c] sm:$0xf]
  %v51 = vunpack.c.l.b16 %v27
  %v52 = vunpack.c.l.b16 %v28
  %v53 = vunpack.c.l.b16 %v29
  %v54 = vunpack.c.l.b16 %v30
  %v55 = vpack.c.b16 %v52, %v51
  %v56 = vpack.c.b16 %v54, %v53
  %v75 = vunpack.c.l.b16 %v31
  %v76 = vunpack.c.l.b16 %v32
  %v77 = vunpack.c.l.b16 %v33
  %v78 = vunpack.c.l.b16 %v34
  %v79 = vunpack.c.l.b16 %v35
  %v80 = vunpack.c.l.b16 %v36
  %v81 = vunpack.c.l.b16 %v37
  %v82 = vunpack.c.l.b16 %v38
  %v83 = vunpack.c.l.b16 %v39
  %v84 = vunpack.c.l.b16 %v40
  %v85 = vunpack.c.l.b16 %v41
  %v86 = vunpack.c.l.b16 %v42
  %v87 = vunpack.c.l.b16 %v43
  %v88 = vunpack.c.l.b16 %v44
  %v89 = vunpack.c.l.b16 %v45
  %v90 = vunpack.c.l.b16 %v46
  %v91 = vpack.c.b16 %v76, %v75
  %v92 = vpack.c.b16 %v78, %v77
  %v93 = vpack.c.b16 %v80, %v79
  %v94 = vpack.c.b16 %v82, %v81
  %v95 = vpack.c.b16 %v84, %v83
  %v96 = vpack.c.b16 %v86, %v85
  %v97 = vpack.c.b16 %v88, %v87
  %v98 = vpack.c.b16 %v90, %v89
  %107 = vmatprep.subr.bf16.mxu0 0
  %108 = vmatpush1.bf16.msra.mxu0 %v91
  %109 = vmatprep.subr.bf16.mxu0 0
  %110 = vmatpush1.bf16.msra.mxu0 %v92
  %111 = vmatprep.subr.bf16.mxu0 0
  %112 = vmatpush1.bf16.msra.mxu0 %v93
  %113 = vmatprep.subr.bf16.mxu0 0
  %114 = vmatpush1.bf16.msra.mxu0 %v94
  %115 = vmatprep.subr.bf16.mxu0 0
  %116 = vmatpush1.bf16.msra.mxu0 %v95
  %117 = vmatprep.subr.bf16.mxu0 0
  %118 = vmatpush1.bf16.msra.mxu0 %v96
  %119 = vmatprep.subr.bf16.mxu0 0
  %120 = vmatpush1.bf16.msra.mxu0 %v97
  %121 = vmatprep.subr.bf16.mxu0 0
  %122 = vmatpush1.bf16.msra.mxu0 %v98
  %123 = vmatprep.subr.bf16.mxu0 0
  %124 = vmatpush1.bf16.msra.mxu0 0
  %125 = vmatprep.subr.bf16.mxu0 0
  %126 = vmatpush1.bf16.msra.mxu0 0
  %127 = vmatprep.subr.bf16.mxu0 0
  %128 = vmatpush1.bf16.msra.mxu0 0
  %129 = vmatprep.subr.bf16.mxu0 0
  %130 = vmatpush1.bf16.msra.mxu0 0
  %131 = vmatprep.subr.bf16.mxu0 0
  %132 = vmatpush1.bf16.msra.mxu0 0
  %133 = vmatprep.subr.bf16.mxu0 0
  %134 = vmatpush1.bf16.msra.mxu0 0
  %135 = vmatprep.subr.bf16.mxu0 0
  %136 = vmatpush1.bf16.msra.mxu0 0
  %137 = vmatprep.subr.bf16.mxu0 0
  %138 = vmatpush1.bf16.msra.mxu0 0
  %139 = vmatprep.mubr.bf16.mxu0 0
  %140 = vmatmul.mubr.bf16.gmra.mrb[0].mxu0 %v55
  %v141 = vpop.f32.mrb[0].mxu0
  %v142 = vadd.f32 0.0, %v141
  %v143 = vpop.f32.mrb[0].mxu0
  %v144 = vpop.f32.mrb[0].mxu0
  %v145 = vadd.f32 0.0, %v144
  %v146 = vpop.f32.mrb[0].mxu0
  %147 = vmatprep.mubr.bf16.mxu0 0
  %148 = vmatmul.mubr.bf16.gmra.mrb[0].mxu0 %v56
  %v149 = vpop.f32.mrb[0].mxu0
  %v150 = vadd.f32 0.0, %v149
  %v151 = vpop.f32.mrb[0].mxu0
  %v152 = vpop.f32.mrb[0].mxu0
  %v153 = vadd.f32 0.0, %v152
  %v154 = vpop.f32.mrb[0].mxu0
  %155 = vdwg.mxu0
  %v156 = vadd.f32 %v23, %v142
  %v157 = vadd.f32 %v24, %v145
  %v158 = vadd.f32 %v25, %v150
  %v159 = vadd.f32 %v26, %v153
  %160 = vst [vmem:[#allocation2] sm:$0xff] %v156
  %161 = vst [vmem:[#allocation2 + $0x8] sm:$0xff] %v157
  %162 = vst [vmem:[#allocation2 + $0x10] sm:$0xff] %v158
  %163 = vst [vmem:[#allocation2 + $0x18] sm:$0xff] %v159
  // Predicated region
  $region18: #{primary_caps_forward.1} parent=0 // pred_check
    %p164 = pneg %p15
  $region19: #{primary_caps_forward.1} parent=0 // pred_check_branch
    %166 = sbr.rel (%p164) target = $region21
  $region20: #{primary_caps_forward.1} parent=0 // pred_region
    %v167 = vld [vmem:[#allocation2] sm:$0xff]
    %v168 = vld [vmem:[%s2] sm:$0xff]
    %170 = vset.pattern.permute.xlu0 0
    %171 = vperm.xlu0 %170, %v168
    %v172 = vpop.permute.xlu0 %171
    %v174 = vadd.f32 %v167, %v172
    %v175 = vmul.f32 %v174, %v174
    %v176 = vrot.slane %v175, 4
    %v177 = vadd.f32 %v175, %v176
    %v178 = vrot.slane %v177, 2
    %v179 = vadd.f32 %v177, %v178
    %v180 = vrot.slane %v179, 1
    %v181 = vadd.f32 %v179, %v180
    %v182 = vadd.f32 %v181, 1e-12
    %v183 = vadd.f32 %v181, 1.0
    %v184 = vmul.f32 %v182, %v183
    %v185 = vmul.f32 %v184, %v183
    %v186 = vrsqrt.pop %v185
    %v187 = vmul.f32 %v181, %v186
    %v188 = vmul.f32 %v174, %v187
    %189 = vst [vmem:[%s3] sm:$0xff] %v188
    %v190 = vld [vmem:[#allocation2 + $0x8] sm:$0xff]
    %v191 = vld [vmem:[%s2 + $0x8] sm:$0xff]
    %193 = vset.pattern.permute.xlu0 0
    %194 = vperm.xlu0 %193, %v191
    %v195 = vpop.permute.xlu0 %194
    %v197 = vadd.f32 %v190, %v195
    %v198 = vmul.f32 %v197, %v197
    %v199 = vrot.slane %v198, 4
    %v200 = vadd.f32 %v198, %v199
    %v201 = vrot.slane %v200, 2
    %v202 = vadd.f32 %v200, %v201
    %v203 = vrot.slane %v202, 1
    %v204 = vadd.f32 %v202, %v203
    %v205 = vadd.f32 %v204, 1e-12
    %v206 = vadd.f32 %v204, 1.0
    %v207 = vmul.f32 %v205, %v206
    %v208 = vmul.f32 %v207, %v206
    %v209 = vrsqrt.pop %v208
    %v210 = vmul.f32 %v204, %v209
    %v211 = vmul.f32 %v197, %v210
    %212 = vst [vmem:[%s3 + $0x8] sm:$0xff] %v211
    %v213 = vld [vmem:[#allocation2 + $0x10] sm:$0xff]
    %v214 = vld [vmem:[%s2 + $0x10] sm:$0xff]
    %216 = vset.pattern.permute.xlu0 0
    %217 = vperm.xlu0 %216, %v214
    %v218 = vpop.permute.xlu0 %217
    %v220 = vadd.f32 %v213, %v218
    %v221 = vmul.f32 %v220, %v220
    %v222 = vrot.slane %v221, 4
    %v223 = vadd.f32 %v221, %v222
    %v224 = vrot.slane %v223, 2
    %v225 = vadd.f32 %v223, %v224
    %v226 = vrot.slane %v225, 1
    %v227 = vadd.f32 %v225, %v226
    %v228 = vadd.f32 %v227, 1e-12
    %v229 = vadd.f32 %v227, 1.0
    %v230 = vmul.f32 %v228, %v229
    %v231 = vmul.f32 %v230, %v229
    %v232 = vrsqrt.pop %v231
    %v233 = vmul.f32 %v227, %v232
    %v234 = vmul.f32 %v220, %v233
    %235 = vst [vmem:[%s3 + $0x10] sm:$0xff] %v234
    %v236 = vld [vmem:[#allocation2 + $0x18] sm:$0xff]
    %v237 = vld [vmem:[%s2 + $0x18] sm:$0xff]
    %239 = vset.pattern.permute.xlu0 0
    %240 = vperm.xlu0 %239, %v237
    %v241 = vpop.permute.xlu0 %240
    %v243 = vadd.f32 %v236, %v241
    %v244 = vmul.f32 %v243, %v243
    %v245 = vrot.slane %v244, 4
    %v246 = vadd.f32 %v244, %v245
    %v247 = vrot.slane %v246, 2
    %v248 = vadd.f32 %v246, %v247
    %v249 = vrot.slane %v248, 1
    %v250 = vadd.f32 %v248, %v249
    %v251 = vadd.f32 %v250, 1e-12
    %v252 = vadd.f32 %v250, 1.0
    %v253 = vmul.f32 %v251, %v252
    %v254 = vmul.f32 %v253, %v252
    %v255 = vrsqrt.pop %v254
    %v256 = vmul.f32 %v250, %v255
    %v257 = vmul.f32 %v243, %v256
    %258 = vst [vmem:[%s3 + $0x18] sm:$0xff] %v257
  $region21: #{primary_caps_forward.1} parent=0 // pred_fallthru
    _
  // Predicated region
  $region22: #{primary_caps_forward.1} parent=0 // pred_check
    _
  $region23: #{primary_caps_forward.1} parent=0 // pred_check_branch
    %260 = sbr.rel (0) target = $region25
  $region24: #{primary_caps_forward.1} parent=0 // pred_region
    _
  $region25: #{primary_caps_forward.1} parent=0 // pred_fallthru
    _
  // Predicated region
  $region26: #{primary_caps_forward.1} parent=0 // pred_check
    _
  $region27: #{primary_caps_forward.1} parent=0 // pred_check_branch
    %262 = sbr.rel (0) target = $region29
  $region28: #{primary_caps_forward.1} parent=0 // pred_region
    _
  $region29: #{primary_caps_forward.1} parent=0 // pred_fallthru
    _

</llo_original>
